<compile_context>
chip_gen: v7x
topology: tpu7x:2x2x1
jax: 0.10.0
libtpu: 0.0.40
codegen_flags: <defaults>
</compile_context>

<pallas_src>
import functools

import jax
import jax.numpy as jnp
from jax.experimental import pallas as pl
from jax.experimental.pallas import tpu as pltpu


def _elu(x):
    # PyTorch nn.ELU (alpha=1): x if x > 0 else exp(x) - 1.
    # jnp.where is a true select, so the discarded exp() of a large positive x
    # never propagates (do NOT replace with arithmetic masking).
    return jnp.where(x > 0, x, jnp.exp(x) - 1.0)


# ---------------------------------------------------------------------------
# Pass 1: shared layers  Linear -> ELU -> Linear -> ELU -> Linear  (per row tile)
# Also emits per-tile partial sum / sum-of-squares of z (padded rows masked) so
# the full-batch BatchNorm stats are finished over `grid` rows in XLA instead
# of re-reading the whole (N, deconf) z from HBM.
# ---------------------------------------------------------------------------
def shared_kernel(x_ref, w1_ref, b1_ref, w2_ref, b2_ref, w3_ref, b3_ref,
                  z_ref, zsum_ref, zsq_ref, *, n_valid, block_rows, mask_pad):
    h = _elu(jnp.dot(x_ref[...], w1_ref[...],
                     preferred_element_type=jnp.float32) + b1_ref[...])
    h = _elu(jnp.dot(h, w2_ref[...],
                     preferred_element_type=jnp.float32) + b2_ref[...])
    z = jnp.dot(h, w3_ref[...],
                preferred_element_type=jnp.float32) + b3_ref[...]
    z_ref[...] = z

    if mask_pad:
        row = (pl.program_id(0) * block_rows
               + jax.lax.broadcasted_iota(jnp.int32, (block_rows, 1), 0))
        z = jnp.where(row < n_valid, z, 0.0)
    zsum_ref[...] = jnp.sum(z, axis=0, keepdims=True)
    zsq_ref[...] = jnp.sum(z * z, axis=0, keepdims=True)


# ---------------------------------------------------------------------------
# Pass 2: BatchNorm apply (precomputed scale/shift -> one FMA) + fused heads.
# The two heads are packed block-diagonally so a single 3-matmul path produces
# the (rows, 2) head outputs; the per-row treatment select happens in XLA.
# ---------------------------------------------------------------------------
def heads_kernel(z_ref, scale_ref, shift_ref,
                 hw1_ref, hb1_ref, hw2_ref, hb2_ref, hw3_ref, hb3_ref,
                 o_ref, repres_ref):
    rep = z_ref[...] * scale_ref[...] + shift_ref[...]
    repres_ref[...] = rep

    a = _elu(jnp.dot(rep, hw1_ref[...],
                     preferred_element_type=jnp.float32) + hb1_ref[...])
    a = _elu(jnp.dot(a, hw2_ref[...],
                     preferred_element_type=jnp.float32) + hb2_ref[...])
    o_ref[...] = jnp.dot(a, hw3_ref[...],
                         preferred_element_type=jnp.float32) + hb3_ref[...]  # (rows, 2)


# ---------------------------------------------------------------------------
# Wrapper
# ---------------------------------------------------------------------------
def _round_up(n, m):
    return (n + m - 1) // m * m


def _cdiv(a, b):
    return -(-a // b)


def _pick_block_rows(n, input_dim, deconf_dim, cap=2048, buf_budget=32 << 20):
    """VMEM-aware row tile, rounded to a multiple of 8.

    For mid/large batches, picks a tile size that yields an EVEN number of
    tiles so v7x's two TensorCores get balanced work under ("parallel",).
    """
    def lanes(d):
        return _round_up(max(d, 1), 128)

    # bytes per row of the double-buffered row tiles (lane-padded), worst pass:
    #   pass 1: x in + z out     pass 2: z in + repres out + o out
    per_row = 2 * 4 * max(lanes(input_dim) + lanes(deconf_dim),
                          2 * lanes(deconf_dim) + lanes(2))
    bm_cap = max(8, min(cap, buf_budget // per_row) // 8 * 8)

    if n <= 512:                               # small batch: single tile
        return min(bm_cap, _round_up(max(n, 1), 8))

    n_tiles = max(2, _cdiv(n, bm_cap))
    n_tiles += n_tiles % 2                     # even tile count for 2 TCs (v7x)
    return min(bm_cap, _round_up(_cdiv(n, n_tiles), 8))


def tarnet_forward(x, t, params, *, block_rows=None, interpret=False):
    """Returns (res, repres) matching the PyTorch module's forward()."""
    n, input_dim = x.shape
    deconf_dim = params["w3"].shape[1]
    outcome_dim = params["h0w1"].shape[1]

    bm = block_rows or _pick_block_rows(n, input_dim, deconf_dim)
    n_pad = _round_up(n, bm)
    grid_n = n_pad // bm
    grid = (grid_n,)

    x_f32 = x.astype(jnp.float32)
    if n_pad != n:
        x_f32 = jnp.pad(x_f32, ((0, n_pad - n), (0, 0)))

    compiler_params = pltpu.CompilerParams(
        dimension_semantics=("parallel",),
        vmem_limit_bytes=48 * 1024 * 1024,
    )

    def rows(d):
        return pl.BlockSpec((bm, d), lambda i: (i, 0))

    def whole(a):
        nd = a.ndim
        return pl.BlockSpec(a.shape, lambda i, nd=nd: (0,) * nd)

    # per-tile partial-stat outputs: (grid, 1, deconf), leading dim squeezed
    psum_spec = pl.BlockSpec((None, 1, deconf_dim), lambda i: (i, 0, 0))
    psum_shape = jax.ShapeDtypeStruct((grid_n, 1, deconf_dim), jnp.float32)

    # -------- pass 1: shared layers -> z (+ partial BN stats) --------
    shared_args = (x_f32, params["w1"], params["b1"], params["w2"], params["b2"],
                   params["w3"], params["b3"])
    kern1 = functools.partial(shared_kernel, n_valid=n, block_rows=bm,
                              mask_pad=(n_pad != n))
    z, zsum, zsq = pl.pallas_call(
        kern1,
        grid=grid,
        in_specs=[rows(input_dim)] + [whole(a) for a in shared_args[1:]],
        out_specs=(rows(deconf_dim), psum_spec, psum_spec),
        out_shape=(
            jax.ShapeDtypeStruct((n_pad, deconf_dim), jnp.float32),
            psum_shape,
            psum_shape,
        ),
        compiler_params=compiler_params,
        interpret=interpret,
    )(*shared_args)

    # -------- full-batch BatchNorm1d stats (training mode, biased var, eps=1e-5) ---
    # Finish the reduction over the tiny (grid, deconf) partial sums in XLA;
    # padded rows were masked inside the kernel, so stats cover exactly n rows.
    inv_n = jnp.float32(1.0 / n)
    mean = jnp.sum(zsum, axis=0) * inv_n                                  # (1, deconf)
    var = jnp.maximum(jnp.sum(zsq, axis=0) * inv_n - mean * mean, 0.0)    # (1, deconf)
    scale = params["gamma"] * jax.lax.rsqrt(var + 1e-5)
    shift = params["beta"] - mean * scale

    # -------- fuse the two outcome heads into one block-diagonal path (once) ------
    od = outcome_dim
    zero_oo = jnp.zeros((od, od), jnp.float32)
    zero_o1 = jnp.zeros((od, 1), jnp.float32)
    hw1 = jnp.concatenate([params["h0w1"], params["h1w1"]], axis=1)            # (deconf, 2*od)
    hb1 = jnp.concatenate([params["h0b1"], params["h1b1"]], axis=1)            # (1, 2*od)
    hw2 = jnp.block([[params["h0w2"], zero_oo], [zero_oo, params["h1w2"]]])    # (2*od, 2*od)
    hb2 = jnp.concatenate([params["h0b2"], params["h1b2"]], axis=1)            # (1, 2*od)
    hw3 = jnp.block([[params["h0w3"], zero_o1], [zero_o1, params["h1w3"]]])    # (2*od, 2)
    hb3 = jnp.concatenate([params["h0b3"], params["h1b3"]], axis=1)            # (1, 2)

    head_args = (z, scale, shift, hw1, hb1, hw2, hb2, hw3, hb3)
    o, repres = pl.pallas_call(
        heads_kernel,
        grid=grid,
        in_specs=[rows(deconf_dim)] + [whole(a) for a in head_args[1:]],
        out_specs=(rows(2), rows(deconf_dim)),
        out_shape=(
            jax.ShapeDtypeStruct((n_pad, 2), jnp.float32),
            jax.ShapeDtypeStruct((n_pad, deconf_dim), jnp.float32),
        ),
        compiler_params=compiler_params,
        interpret=interpret,
    )(*head_args)

    # -------- per-row treatment selection on the tiny (N, 2) result (XLA) --------
    t_flat = t.reshape(-1).astype(jnp.int32)
    o_valid = o[:n]
    res = jnp.where(t_flat == 1, o_valid[:, 1], o_valid[:, 0])
    return res, repres[:n]


def init_params(key, input_dim, hidden_dim=5, deconf_dim=2, outcome_dim=5):
    """Deterministic parameter init (PyTorch-Linear-style uniform ranges)."""
    def linear(key, in_dim, out_dim):
        kw, kb = jax.random.split(key)
        bound = 1.0 / jnp.sqrt(in_dim)
        w = jax.random.uniform(kw, (in_dim, out_dim), jnp.float32, -bound, bound)
        b = jax.random.uniform(kb, (1, out_dim), jnp.float32, -bound, bound)
        return w, b

    keys = jax.random.split(key, 9)
    p = {}
    # shared layers
    p["w1"], p["b1"] = linear(keys[0], input_dim, hidden_dim)
    p["w2"], p["b2"] = linear(keys[1], hidden_dim, hidden_dim)
    p["w3"], p["b3"] = linear(keys[2], hidden_dim, deconf_dim)
    # batchnorm affine params (PyTorch default init)
    p["gamma"] = jnp.ones((1, deconf_dim), jnp.float32)
    p["beta"] = jnp.zeros((1, deconf_dim), jnp.float32)
    # two outcome heads
    p["h0w1"], p["h0b1"] = linear(keys[3], deconf_dim, outcome_dim)
    p["h0w2"], p["h0b2"] = linear(keys[4], outcome_dim, outcome_dim)
    p["h0w3"], p["h0b3"] = linear(keys[5], outcome_dim, 1)
    p["h1w1"], p["h1b1"] = linear(keys[6], deconf_dim, outcome_dim)
    p["h1w2"], p["h1b2"] = linear(keys[7], outcome_dim, outcome_dim)
    p["h1w3"], p["h1b3"] = linear(keys[8], outcome_dim, 1)
    return p


def tarnet_forward_ref(x, t, params):
    """Pure-JAX reference for correctness checking."""
    h = _elu(x @ params["w1"] + params["b1"])
    h = _elu(h @ params["w2"] + params["b2"])
    z = h @ params["w3"] + params["b3"]
    mean = jnp.mean(z, axis=0, keepdims=True)
    var = jnp.mean((z - mean) ** 2, axis=0, keepdims=True)
    rep = (z - mean) / jnp.sqrt(var + 1e-5) * params["gamma"] + params["beta"]

    def head(pfx):
        a = _elu(rep @ params[pfx + "w1"] + params[pfx + "b1"])
        a = _elu(a @ params[pfx + "w2"] + params[pfx + "b2"])
        return a @ params[pfx + "w3"] + params[pfx + "b3"]

    o0 = head("h0")[:, 0]
    o1 = head("h1")[:, 0]
    res = jnp.where(t == 1, o1, o0)
    return res, rep


if __name__ == "__main__":
    # Small deterministic problem: batch=8, input_dim=16, defaults otherwise.
    key = jax.random.PRNGKey(0)
    k_x, k_t, k_p = jax.random.split(key, 3)

    N, INPUT_DIM = 8, 16
    x = jax.random.normal(k_x, (N, INPUT_DIM), jnp.float32)
    t = jax.random.bernoulli(k_t, 0.5, (N,)).astype(jnp.int32)
    params = init_params(k_p, INPUT_DIM, hidden_dim=5, deconf_dim=2, outcome_dim=5)

    fwd = jax.jit(tarnet_forward)
    res, repres = jax.block_until_ready(fwd(x, t, params))

    res_ref, repres_ref = tarnet_forward_ref(x, t, params)
    assert res.shape == (N,) and repres.shape == (N, 2)
    assert jnp.allclose(res, res_ref, atol=1e-5, rtol=1e-5), (
        float(jnp.max(jnp.abs(res - res_ref))))
    assert jnp.allclose(repres, repres_ref, atol=1e-5, rtol=1e-5), (
        float(jnp.max(jnp.abs(repres - repres_ref))))

    print("KERNEL_OK")
</pallas_src>

<mosaic_0001>
module attributes {stable_mosaic.version = 11 : i64} {
  func.func @shared_kernel(%arg0: i32, %arg1: memref<8x16xf32, #tpu.memory_space<vmem>>, %arg2: memref<16x5xf32, #tpu.memory_space<vmem>>, %arg3: memref<1x5xf32, #tpu.memory_space<vmem>>, %arg4: memref<5x5xf32, #tpu.memory_space<vmem>>, %arg5: memref<1x5xf32, #tpu.memory_space<vmem>>, %arg6: memref<5x2xf32, #tpu.memory_space<vmem>>, %arg7: memref<1x2xf32, #tpu.memory_space<vmem>>, %arg8: memref<8x2xf32, #tpu.memory_space<vmem>>, %arg9: memref<1x1x2xf32, #tpu.memory_space<vmem>>, %arg10: memref<1x1x2xf32, #tpu.memory_space<vmem>>) attributes {dimension_semantics = [#tpu.dimension_semantics<parallel>], iteration_bounds = array<i64: 1>, scalar_prefetch = 0 : i64, scratch_operands = 0 : i64, tpu.core_type = #tpu.core_type<tc>, window_params = [{transform_indices = @transform_0, window_bounds = array<i64: 8, 16>}, {pipeline_mode = #tpu.pipeline_mode<synchronous>, transform_indices = @transform_1, window_bounds = array<i64: 16, 5>}, {pipeline_mode = #tpu.pipeline_mode<synchronous>, transform_indices = @transform_2, window_bounds = array<i64: 1, 5>}, {pipeline_mode = #tpu.pipeline_mode<synchronous>, transform_indices = @transform_3, window_bounds = array<i64: 5, 5>}, {pipeline_mode = #tpu.pipeline_mode<synchronous>, transform_indices = @transform_4, window_bounds = array<i64: 1, 5>}, {pipeline_mode = #tpu.pipeline_mode<synchronous>, transform_indices = @transform_5, window_bounds = array<i64: 5, 2>}, {pipeline_mode = #tpu.pipeline_mode<synchronous>, transform_indices = @transform_6, window_bounds = array<i64: 1, 2>}, {transform_indices = @transform_7, window_bounds = array<i64: 8, 2>}, {transform_indices = @transform_8, window_bounds = array<i64: 1, 1, 2>}, {transform_indices = @transform_9, window_bounds = array<i64: 1, 1, 2>}]} {
    %c0 = arith.constant 0 : index
    %c0_0 = arith.constant 0 : index
    %0 = vector.load %arg1[%c0, %c0_0] : memref<8x16xf32, #tpu.memory_space<vmem>>, vector<8x16xf32>
    %c0_1 = arith.constant 0 : index
    %c0_2 = arith.constant 0 : index
    %1 = vector.load %arg2[%c0_1, %c0_2] : memref<16x5xf32, #tpu.memory_space<vmem>>, vector<16x5xf32>
    %cst = arith.constant dense<0.000000e+00> : vector<8x5xf32>
    %2 = tpu.matmul %0, %1, %cst {dimension_numbers = #tpu.dot_dimension_numbers<[1], [0], [0], [1], [0, 0, 1, 1], [], []>} : vector<8x16xf32>, vector<16x5xf32>, vector<8x5xf32> -> vector<8x5xf32>
    %c0_3 = arith.constant 0 : index
    %c0_4 = arith.constant 0 : index
    %3 = vector.load %arg3[%c0_3, %c0_4] : memref<1x5xf32, #tpu.memory_space<vmem>>, vector<1x5xf32>
    %4 = vector.broadcast %3 : vector<1x5xf32> to vector<8x5xf32>
    %5 = arith.addf %2, %4 : vector<8x5xf32>
    %cst_5 = arith.constant 0.000000e+00 : f32
    %6 = vector.broadcast %cst_5 : f32 to vector<8x5xf32>
    %7 = arith.cmpf ogt, %5, %6 : vector<8x5xf32>
    %8 = math.exp %5 : vector<8x5xf32>
    %cst_6 = arith.constant 1.000000e+00 : f32
    %9 = vector.broadcast %cst_6 : f32 to vector<8x5xf32>
    %10 = arith.subf %8, %9 : vector<8x5xf32>
    %11 = arith.select %7, %5, %10 : vector<8x5xi1>, vector<8x5xf32>
    %c0_7 = arith.constant 0 : index
    %c0_8 = arith.constant 0 : index
    %12 = vector.load %arg4[%c0_7, %c0_8] : memref<5x5xf32, #tpu.memory_space<vmem>>, vector<5x5xf32>
    %cst_9 = arith.constant dense<0.000000e+00> : vector<8x5xf32>
    %13 = tpu.matmul %11, %12, %cst_9 {dimension_numbers = #tpu.dot_dimension_numbers<[1], [0], [0], [1], [0, 0, 1, 1], [], []>} : vector<8x5xf32>, vector<5x5xf32>, vector<8x5xf32> -> vector<8x5xf32>
    %c0_10 = arith.constant 0 : index
    %c0_11 = arith.constant 0 : index
    %14 = vector.load %arg5[%c0_10, %c0_11] : memref<1x5xf32, #tpu.memory_space<vmem>>, vector<1x5xf32>
    %15 = vector.broadcast %14 : vector<1x5xf32> to vector<8x5xf32>
    %16 = arith.addf %13, %15 : vector<8x5xf32>
    %cst_12 = arith.constant 0.000000e+00 : f32
    %17 = vector.broadcast %cst_12 : f32 to vector<8x5xf32>
    %18 = arith.cmpf ogt, %16, %17 : vector<8x5xf32>
    %19 = math.exp %16 : vector<8x5xf32>
    %cst_13 = arith.constant 1.000000e+00 : f32
    %20 = vector.broadcast %cst_13 : f32 to vector<8x5xf32>
    %21 = arith.subf %19, %20 : vector<8x5xf32>
    %22 = arith.select %18, %16, %21 : vector<8x5xi1>, vector<8x5xf32>
    %c0_14 = arith.constant 0 : index
    %c0_15 = arith.constant 0 : index
    %23 = vector.load %arg6[%c0_14, %c0_15] : memref<5x2xf32, #tpu.memory_space<vmem>>, vector<5x2xf32>
    %cst_16 = arith.constant dense<0.000000e+00> : vector<8x2xf32>
    %24 = tpu.matmul %22, %23, %cst_16 {dimension_numbers = #tpu.dot_dimension_numbers<[1], [0], [0], [1], [0, 0, 1, 1], [], []>} : vector<8x5xf32>, vector<5x2xf32>, vector<8x2xf32> -> vector<8x2xf32>
    %c0_17 = arith.constant 0 : index
    %c0_18 = arith.constant 0 : index
    %25 = vector.load %arg7[%c0_17, %c0_18] : memref<1x2xf32, #tpu.memory_space<vmem>>, vector<1x2xf32>
    %26 = vector.broadcast %25 : vector<1x2xf32> to vector<8x2xf32>
    %27 = arith.addf %24, %26 : vector<8x2xf32>
    %c0_19 = arith.constant 0 : index
    %c0_20 = arith.constant 0 : index
    %28 = vector.load %arg8[%c0_19, %c0_20] : memref<8x2xf32, #tpu.memory_space<vmem>>, vector<8x2xf32>
    tpu.vector_store %arg8[%c0_19, %c0_20], %27 {strides = array<i32>} : memref<8x2xf32, #tpu.memory_space<vmem>>, vector<8x2xf32>,
    %cst_21 = arith.constant dense<0.000000e+00> : vector<2xf32>
    %29 = vector.multi_reduction <add>, %27, %cst_21 [0] : vector<8x2xf32> to vector<2xf32>
    %30 = vector.shape_cast %29 : vector<2xf32> to vector<1x2xf32>
    %c0_22 = arith.constant 0 : index
    %c0_23 = arith.constant 0 : index
    %c0_24 = arith.constant 0 : index
    %31 = vector.load %arg9[%c0_22, %c0_23, %c0_24] : memref<1x1x2xf32, #tpu.memory_space<vmem>>, vector<1x1x2xf32>
    %32 = vector.shape_cast %31 : vector<1x1x2xf32> to vector<1x2xf32>
    %33 = vector.shape_cast %30 : vector<1x2xf32> to vector<1x1x2xf32>
    tpu.vector_store %arg9[%c0_22, %c0_23, %c0_24], %33 {strides = array<i32>} : memref<1x1x2xf32, #tpu.memory_space<vmem>>, vector<1x1x2xf32>,
    %34 = arith.mulf %27, %27 : vector<8x2xf32>
    %cst_25 = arith.constant dense<0.000000e+00> : vector<2xf32>
    %35 = vector.multi_reduction <add>, %34, %cst_25 [0] : vector<8x2xf32> to vector<2xf32>
    %36 = vector.shape_cast %35 : vector<2xf32> to vector<1x2xf32>
    %c0_26 = arith.constant 0 : index
    %c0_27 = arith.constant 0 : index
    %c0_28 = arith.constant 0 : index
    %37 = vector.load %arg10[%c0_26, %c0_27, %c0_28] : memref<1x1x2xf32, #tpu.memory_space<vmem>>, vector<1x1x2xf32>
    %38 = vector.shape_cast %37 : vector<1x1x2xf32> to vector<1x2xf32>
    %39 = vector.shape_cast %36 : vector<1x2xf32> to vector<1x1x2xf32>
    tpu.vector_store %arg10[%c0_26, %c0_27, %c0_28], %39 {strides = array<i32>} : memref<1x1x2xf32, #tpu.memory_space<vmem>>, vector<1x1x2xf32>,
    return
  }
  func.func @transform_0(%arg0: i32) -> (i32, i32) {
    %c0_i32 = arith.constant 0 : i32
    %c0_i32_0 = arith.constant 0 : i32
    return %arg0, %c0_i32 : i32, i32
  }
  func.func @transform_1(%arg0: i32) -> (i32, i32) {
    %c0_i32 = arith.constant 0 : i32
    %c0_i32_0 = arith.constant 0 : i32
    %c0_i32_1 = arith.constant 0 : i32
    return %c0_i32, %c0_i32_0 : i32, i32
  }
  func.func @transform_2(%arg0: i32) -> (i32, i32) {
    %c0_i32 = arith.constant 0 : i32
    %c0_i32_0 = arith.constant 0 : i32
    %c0_i32_1 = arith.constant 0 : i32
    return %c0_i32, %c0_i32_0 : i32, i32
  }
  func.func @transform_3(%arg0: i32) -> (i32, i32) {
    %c0_i32 = arith.constant 0 : i32
    %c0_i32_0 = arith.constant 0 : i32
    %c0_i32_1 = arith.constant 0 : i32
    return %c0_i32, %c0_i32_0 : i32, i32
  }
  func.func @transform_4(%arg0: i32) -> (i32, i32) {
    %c0_i32 = arith.constant 0 : i32
    %c0_i32_0 = arith.constant 0 : i32
    %c0_i32_1 = arith.constant 0 : i32
    return %c0_i32, %c0_i32_0 : i32, i32
  }
  func.func @transform_5(%arg0: i32) -> (i32, i32) {
    %c0_i32 = arith.constant 0 : i32
    %c0_i32_0 = arith.constant 0 : i32
    %c0_i32_1 = arith.constant 0 : i32
    return %c0_i32, %c0_i32_0 : i32, i32
  }
  func.func @transform_6(%arg0: i32) -> (i32, i32) {
    %c0_i32 = arith.constant 0 : i32
    %c0_i32_0 = arith.constant 0 : i32
    %c0_i32_1 = arith.constant 0 : i32
    return %c0_i32, %c0_i32_0 : i32, i32
  }
  func.func @transform_7(%arg0: i32) -> (i32, i32) {
    %c0_i32 = arith.constant 0 : i32
    %c0_i32_0 = arith.constant 0 : i32
    return %arg0, %c0_i32 : i32, i32
  }
  func.func @transform_8(%arg0: i32) -> (i32, i32, i32) {
    %c0_i32 = arith.constant 0 : i32
    %c0_i32_0 = arith.constant 0 : i32
    %c0_i32_1 = arith.constant 0 : i32
    return %arg0, %c0_i32, %c0_i32_0 : i32, i32, i32
  }
  func.func @transform_9(%arg0: i32) -> (i32, i32, i32) {
    %c0_i32 = arith.constant 0 : i32
    %c0_i32_0 = arith.constant 0 : i32
    %c0_i32_1 = arith.constant 0 : i32
    return %arg0, %c0_i32, %c0_i32_0 : i32, i32, i32
  }
}

module attributes {stable_mosaic.version = 11 : i64} {
  func.func @heads_kernel(%arg0: i32, %arg1: memref<8x2xf32, #tpu.memory_space<vmem>>, %arg2: memref<1x2xf32, #tpu.memory_space<vmem>>, %arg3: memref<1x2xf32, #tpu.memory_space<vmem>>, %arg4: memref<2x10xf32, #tpu.memory_space<vmem>>, %arg5: memref<1x10xf32, #tpu.memory_space<vmem>>, %arg6: memref<10x10xf32, #tpu.memory_space<vmem>>, %arg7: memref<1x10xf32, #tpu.memory_space<vmem>>, %arg8: memref<10x2xf32, #tpu.memory_space<vmem>>, %arg9: memref<1x2xf32, #tpu.memory_space<vmem>>, %arg10: memref<8x2xf32, #tpu.memory_space<vmem>>, %arg11: memref<8x2xf32, #tpu.memory_space<vmem>>) attributes {dimension_semantics = [#tpu.dimension_semantics<parallel>], iteration_bounds = array<i64: 1>, scalar_prefetch = 0 : i64, scratch_operands = 0 : i64, tpu.core_type = #tpu.core_type<tc>, window_params = [{transform_indices = @transform_0, window_bounds = array<i64: 8, 2>}, {pipeline_mode = #tpu.pipeline_mode<synchronous>, transform_indices = @transform_1, window_bounds = array<i64: 1, 2>}, {pipeline_mode = #tpu.pipeline_mode<synchronous>, transform_indices = @transform_2, window_bounds = array<i64: 1, 2>}, {pipeline_mode = #tpu.pipeline_mode<synchronous>, transform_indices = @transform_3, window_bounds = array<i64: 2, 10>}, {pipeline_mode = #tpu.pipeline_mode<synchronous>, transform_indices = @transform_4, window_bounds = array<i64: 1, 10>}, {pipeline_mode = #tpu.pipeline_mode<synchronous>, transform_indices = @transform_5, window_bounds = array<i64: 10, 10>}, {pipeline_mode = #tpu.pipeline_mode<synchronous>, transform_indices = @transform_6, window_bounds = array<i64: 1, 10>}, {pipeline_mode = #tpu.pipeline_mode<synchronous>, transform_indices = @transform_7, window_bounds = array<i64: 10, 2>}, {pipeline_mode = #tpu.pipeline_mode<synchronous>, transform_indices = @transform_8, window_bounds = array<i64: 1, 2>}, {transform_indices = @transform_9, window_bounds = array<i64: 8, 2>}, {transform_indices = @transform_10, window_bounds = array<i64: 8, 2>}]} {
    %c0 = arith.constant 0 : index
    %c0_0 = arith.constant 0 : index
    %0 = vector.load %arg1[%c0, %c0_0] : memref<8x2xf32, #tpu.memory_space<vmem>>, vector<8x2xf32>
    %c0_1 = arith.constant 0 : index
    %c0_2 = arith.constant 0 : index
    %1 = vector.load %arg2[%c0_1, %c0_2] : memref<1x2xf32, #tpu.memory_space<vmem>>, vector<1x2xf32>
    %2 = vector.broadcast %1 : vector<1x2xf32> to vector<8x2xf32>
    %3 = arith.mulf %0, %2 : vector<8x2xf32>
    %c0_3 = arith.constant 0 : index
    %c0_4 = arith.constant 0 : index
    %4 = vector.load %arg3[%c0_3, %c0_4] : memref<1x2xf32, #tpu.memory_space<vmem>>, vector<1x2xf32>
    %5 = vector.broadcast %4 : vector<1x2xf32> to vector<8x2xf32>
    %6 = arith.addf %3, %5 : vector<8x2xf32>
    %c0_5 = arith.constant 0 : index
    %c0_6 = arith.constant 0 : index
    %7 = vector.load %arg11[%c0_5, %c0_6] : memref<8x2xf32, #tpu.memory_space<vmem>>, vector<8x2xf32>
    tpu.vector_store %arg11[%c0_5, %c0_6], %6 {strides = array<i32>} : memref<8x2xf32, #tpu.memory_space<vmem>>, vector<8x2xf32>,
    %c0_7 = arith.constant 0 : index
    %c0_8 = arith.constant 0 : index
    %8 = vector.load %arg4[%c0_7, %c0_8] : memref<2x10xf32, #tpu.memory_space<vmem>>, vector<2x10xf32>
    %cst = arith.constant dense<0.000000e+00> : vector<8x10xf32>
    %9 = tpu.matmul %6, %8, %cst {dimension_numbers = #tpu.dot_dimension_numbers<[1], [0], [0], [1], [0, 0, 1, 1], [], []>} : vector<8x2xf32>, vector<2x10xf32>, vector<8x10xf32> -> vector<8x10xf32>
    %c0_9 = arith.constant 0 : index
    %c0_10 = arith.constant 0 : index
    %10 = vector.load %arg5[%c0_9, %c0_10] : memref<1x10xf32, #tpu.memory_space<vmem>>, vector<1x10xf32>
    %11 = vector.broadcast %10 : vector<1x10xf32> to vector<8x10xf32>
    %12 = arith.addf %9, %11 : vector<8x10xf32>
    %cst_11 = arith.constant 0.000000e+00 : f32
    %13 = vector.broadcast %cst_11 : f32 to vector<8x10xf32>
    %14 = arith.cmpf ogt, %12, %13 : vector<8x10xf32>
    %15 = math.exp %12 : vector<8x10xf32>
    %cst_12 = arith.constant 1.000000e+00 : f32
    %16 = vector.broadcast %cst_12 : f32 to vector<8x10xf32>
    %17 = arith.subf %15, %16 : vector<8x10xf32>
    %18 = arith.select %14, %12, %17 : vector<8x10xi1>, vector<8x10xf32>
    %c0_13 = arith.constant 0 : index
    %c0_14 = arith.constant 0 : index
    %19 = vector.load %arg6[%c0_13, %c0_14] : memref<10x10xf32, #tpu.memory_space<vmem>>, vector<10x10xf32>
    %cst_15 = arith.constant dense<0.000000e+00> : vector<8x10xf32>
    %20 = tpu.matmul %18, %19, %cst_15 {dimension_numbers = #tpu.dot_dimension_numbers<[1], [0], [0], [1], [0, 0, 1, 1], [], []>} : vector<8x10xf32>, vector<10x10xf32>, vector<8x10xf32> -> vector<8x10xf32>
    %c0_16 = arith.constant 0 : index
    %c0_17 = arith.constant 0 : index
    %21 = vector.load %arg7[%c0_16, %c0_17] : memref<1x10xf32, #tpu.memory_space<vmem>>, vector<1x10xf32>
    %22 = vector.broadcast %21 : vector<1x10xf32> to vector<8x10xf32>
    %23 = arith.addf %20, %22 : vector<8x10xf32>
    %cst_18 = arith.constant 0.000000e+00 : f32
    %24 = vector.broadcast %cst_18 : f32 to vector<8x10xf32>
    %25 = arith.cmpf ogt, %23, %24 : vector<8x10xf32>
    %26 = math.exp %23 : vector<8x10xf32>
    %cst_19 = arith.constant 1.000000e+00 : f32
    %27 = vector.broadcast %cst_19 : f32 to vector<8x10xf32>
    %28 = arith.subf %26, %27 : vector<8x10xf32>
    %29 = arith.select %25, %23, %28 : vector<8x10xi1>, vector<8x10xf32>
    %c0_20 = arith.constant 0 : index
    %c0_21 = arith.constant 0 : index
    %30 = vector.load %arg8[%c0_20, %c0_21] : memref<10x2xf32, #tpu.memory_space<vmem>>, vector<10x2xf32>
    %cst_22 = arith.constant dense<0.000000e+00> : vector<8x2xf32>
    %31 = tpu.matmul %29, %30, %cst_22 {dimension_numbers = #tpu.dot_dimension_numbers<[1], [0], [0], [1], [0, 0, 1, 1], [], []>} : vector<8x10xf32>, vector<10x2xf32>, vector<8x2xf32> -> vector<8x2xf32>
    %c0_23 = arith.constant 0 : index
    %c0_24 = arith.constant 0 : index
    %32 = vector.load %arg9[%c0_23, %c0_24] : memref<1x2xf32, #tpu.memory_space<vmem>>, vector<1x2xf32>
    %33 = vector.broadcast %32 : vector<1x2xf32> to vector<8x2xf32>
    %34 = arith.addf %31, %33 : vector<8x2xf32>
    %c0_25 = arith.constant 0 : index
    %c0_26 = arith.constant 0 : index
    %35 = vector.load %arg10[%c0_25, %c0_26] : memref<8x2xf32, #tpu.memory_space<vmem>>, vector<8x2xf32>
    tpu.vector_store %arg10[%c0_25, %c0_26], %34 {strides = array<i32>} : memref<8x2xf32, #tpu.memory_space<vmem>>, vector<8x2xf32>,
    return
  }
  func.func @transform_0(%arg0: i32) -> (i32, i32) {
    %c0_i32 = arith.constant 0 : i32
    %c0_i32_0 = arith.constant 0 : i32
    return %arg0, %c0_i32 : i32, i32
  }
  func.func @transform_1(%arg0: i32) -> (i32, i32) {
    %c0_i32 = arith.constant 0 : i32
    %c0_i32_0 = arith.constant 0 : i32
    %c0_i32_1 = arith.constant 0 : i32
    return %c0_i32, %c0_i32_0 : i32, i32
  }
  func.func @transform_2(%arg0: i32) -> (i32, i32) {
    %c0_i32 = arith.constant 0 : i32
    %c0_i32_0 = arith.constant 0 : i32
    %c0_i32_1 = arith.constant 0 : i32
    return %c0_i32, %c0_i32_0 : i32, i32
  }
  func.func @transform_3(%arg0: i32) -> (i32, i32) {
    %c0_i32 = arith.constant 0 : i32
    %c0_i32_0 = arith.constant 0 : i32
    %c0_i32_1 = arith.constant 0 : i32
    return %c0_i32, %c0_i32_0 : i32, i32
  }
  func.func @transform_4(%arg0: i32) -> (i32, i32) {
    %c0_i32 = arith.constant 0 : i32
    %c0_i32_0 = arith.constant 0 : i32
    %c0_i32_1 = arith.constant 0 : i32
    return %c0_i32, %c0_i32_0 : i32, i32
  }
  func.func @transform_5(%arg0: i32) -> (i32, i32) {
    %c0_i32 = arith.constant 0 : i32
    %c0_i32_0 = arith.constant 0 : i32
    %c0_i32_1 = arith.constant 0 : i32
    return %c0_i32, %c0_i32_0 : i32, i32
  }
  func.func @transform_6(%arg0: i32) -> (i32, i32) {
    %c0_i32 = arith.constant 0 : i32
    %c0_i32_0 = arith.constant 0 : i32
    %c0_i32_1 = arith.constant 0 : i32
    return %c0_i32, %c0_i32_0 : i32, i32
  }
  func.func @transform_7(%arg0: i32) -> (i32, i32) {
    %c0_i32 = arith.constant 0 : i32
    %c0_i32_0 = arith.constant 0 : i32
    %c0_i32_1 = arith.constant 0 : i32
    return %c0_i32, %c0_i32_0 : i32, i32
  }
  func.func @transform_8(%arg0: i32) -> (i32, i32) {
    %c0_i32 = arith.constant 0 : i32
    %c0_i32_0 = arith.constant 0 : i32
    %c0_i32_1 = arith.constant 0 : i32
    return %c0_i32, %c0_i32_0 : i32, i32
  }
  func.func @transform_9(%arg0: i32) -> (i32, i32) {
    %c0_i32 = arith.constant 0 : i32
    %c0_i32_0 = arith.constant 0 : i32
    return %arg0, %c0_i32 : i32, i32
  }
  func.func @transform_10(%arg0: i32) -> (i32, i32) {
    %c0_i32 = arith.constant 0 : i32
    %c0_i32_0 = arith.constant 0 : i32
    return %arg0, %c0_i32 : i32, i32
  }
}

</mosaic_0001>

<llo_original>
// kernel: tarnet_forward.2
$region0: #{tarnet_forward.2}
  #allocation0 [shape = 'u32[]', space=smem, size = 0x4, offset = 0x4, fixed_abs, tag = 'smem constant byte address 0x4 - core index']
  #allocation1 [shape = 'u32[144,128]{1,0:T(1,128)}', space=vmem, size = 0x12000, scoped, tag = 'internal scratch']
  %s0 = inlined_call_operand.vmem [shape: f32[8,16], index: 0, kind: input, shape index: {}]
  %s1 = inlined_call_operand.vmem [shape: f32[16,5], index: 1, kind: input, shape index: {}]
  %s2 = inlined_call_operand.vmem [shape: f32[1,5], index: 2, kind: input, shape index: {}]
  %s3 = inlined_call_operand.vmem [shape: f32[5,5], index: 3, kind: input, shape index: {}]
  %s4 = inlined_call_operand.vmem [shape: f32[1,5], index: 4, kind: input, shape index: {}]
  %s5 = inlined_call_operand.vmem [shape: f32[5,2], index: 5, kind: input, shape index: {}]
  %s6 = inlined_call_operand.vmem [shape: f32[1,2], index: 6, kind: input, shape index: {}]
  %s7 = inlined_call_operand.vmem [shape: f32[8,2], index: 7, kind: output, shape index: {0}]
  %s8 = inlined_call_operand.vmem [shape: f32[1,1,2], index: 8, kind: output, shape index: {1}]
  %s9 = inlined_call_operand.vmem [shape: f32[1,1,2], index: 9, kind: output, shape index: {2}]
  %10 = xla_tuple %s7, %s8, %s9
  %s11 = sld [smem:[#allocation0]]
  $region54: #{tarnet_forward.2} parent=0
    _
  %s13 = ssub.s32 1, %s11
  %s14 = scalar_select 0, %s13, %s11
  // Predicated region
  $region2: #{tarnet_forward.2} parent=0 // pred_check
    _
  $region3: #{tarnet_forward.2} parent=0 // pred_check_branch
    %16 = sbr.rel (0) target = $region5
  $region4: #{tarnet_forward.2} parent=0 // pred_region
    _
  $region5: #{tarnet_forward.2} parent=0 // pred_fallthru
    _
  // Predicated region
  $region6: #{tarnet_forward.2} parent=0 // pred_check
    _
  $region7: #{tarnet_forward.2} parent=0 // pred_check_branch
    %18 = sbr.rel (0) target = $region9
  $region8: #{tarnet_forward.2} parent=0 // pred_region
    _
  $region9: #{tarnet_forward.2} parent=0 // pred_fallthru
    _
  // Predicated region
  $region10: #{tarnet_forward.2} parent=0 // pred_check
    _
  $region11: #{tarnet_forward.2} parent=0 // pred_check_branch
    %20 = sbr.rel (0) target = $region13
  $region12: #{tarnet_forward.2} parent=0 // pred_region
    _
  $region13: #{tarnet_forward.2} parent=0 // pred_fallthru
    _
  // Predicated region
  $region14: #{tarnet_forward.2} parent=0 // pred_check
    _
  $region15: #{tarnet_forward.2} parent=0 // pred_check_branch
    %22 = sbr.rel (0) target = $region17
  $region16: #{tarnet_forward.2} parent=0 // pred_region
    _
  $region17: #{tarnet_forward.2} parent=0 // pred_fallthru
    _
  // Predicated region
  $region18: #{tarnet_forward.2} parent=0 // pred_check
    _
  $region19: #{tarnet_forward.2} parent=0 // pred_check_branch
    %24 = sbr.rel (0) target = $region21
  $region20: #{tarnet_forward.2} parent=0 // pred_region
    _
  $region21: #{tarnet_forward.2} parent=0 // pred_fallthru
    _
  // Predicated region
  $region22: #{tarnet_forward.2} parent=0 // pred_check
    _
  $region23: #{tarnet_forward.2} parent=0 // pred_check_branch
    %26 = sbr.rel (0) target = $region25
  $region24: #{tarnet_forward.2} parent=0 // pred_region
    _
  $region25: #{tarnet_forward.2} parent=0 // pred_fallthru
    _
  // Predicated region
  $region26: #{tarnet_forward.2} parent=0 // pred_check
    _
  $region27: #{tarnet_forward.2} parent=0 // pred_check_branch
    %28 = sbr.rel (0) target = $region29
  $region28: #{tarnet_forward.2} parent=0 // pred_region
    _
  $region29: #{tarnet_forward.2} parent=0 // pred_fallthru
    _
  %v29 = vld [vmem:[%s0] sm:$0xff]
  %v30 = vld [vmem:[%s1] sm:$0xff]
  %v31 = vld [vmem:[%s1 + $0x8] sm:$0xff]
  %v32 = vld [vmem:[%s2] sm:$0x1]
  %v34 = vlaneseq
  %v35 = vshrl.u32 %v34, 7
  %v36 = vsub.s32 0, %v35
  %v37 = vrot.slane %v32, %v36
  %vm39 = vcmask 130048
  %v41 = vsel %vm39, %v29, 0
  %43 = vmatprep.subr.mxu0 0.0
  %44 = vmatpush1.msra.mxu0 %v30
  %45 = vmatprep.subr.mxu0 0.0
  %46 = vmatpush1.msra.mxu0 %v31
  %47 = vmatprep.subr.mxu0 0.0
  %48 = vmatpush1.msra.mxu0 0.0
  %49 = vmatprep.subr.mxu0 0.0
  %50 = vmatpush1.msra.mxu0 0.0
  %51 = vmatprep.subr.mxu0 0.0
  %52 = vmatpush1.msra.mxu0 0.0
  %53 = vmatprep.subr.mxu0 0.0
  %54 = vmatpush1.msra.mxu0 0.0
  %55 = vmatprep.subr.mxu0 0.0
  %56 = vmatpush1.msra.mxu0 0.0
  %57 = vmatprep.subr.mxu0 0.0
  %58 = vmatpush1.msra.mxu0 0.0
  %59 = vmatprep.subr.mxu0 0.0
  %60 = vmatpush1.msra.mxu0 0.0
  %61 = vmatprep.subr.mxu0 0.0
  %62 = vmatpush1.msra.mxu0 0.0
  %63 = vmatprep.subr.mxu0 0.0
  %64 = vmatpush1.msra.mxu0 0.0
  %65 = vmatprep.subr.mxu0 0.0
  %66 = vmatpush1.msra.mxu0 0.0
  %67 = vmatprep.subr.mxu0 0.0
  %68 = vmatpush1.msra.mxu0 0.0
  %69 = vmatprep.subr.mxu0 0.0
  %70 = vmatpush1.msra.mxu0 0.0
  %71 = vmatprep.subr.mxu0 0.0
  %72 = vmatpush1.msra.mxu0 0.0
  %73 = vmatprep.subr.mxu0 0.0
  %74 = vmatpush1.msra.mxu0 0.0
  %75 = vmatprep.subr.mxu0 0.0
  %76 = vmatpush1.msra.mxu0 0.0
  %77 = vmatprep.subr.mxu0 0.0
  %78 = vmatpush1.msra.mxu0 0.0
  %79 = vmatprep.subr.mxu0 0.0
  %80 = vmatpush1.msra.mxu0 0.0
  %81 = vmatprep.subr.mxu0 0.0
  %82 = vmatpush1.msra.mxu0 0.0
  %83 = vmatprep.subr.mxu0 0.0
  %84 = vmatpush1.msra.mxu0 0.0
  %85 = vmatprep.subr.mxu0 0.0
  %86 = vmatpush1.msra.mxu0 0.0
  %87 = vmatprep.subr.mxu0 0.0
  %88 = vmatpush1.msra.mxu0 0.0
  %89 = vmatprep.subr.mxu0 0.0
  %90 = vmatpush1.msra.mxu0 0.0
  %91 = vmatprep.subr.mxu0 0.0
  %92 = vmatpush1.msra.mxu0 0.0
  %93 = vmatprep.subr.mxu0 0.0
  %94 = vmatpush1.msra.mxu0 0.0
  %95 = vmatprep.subr.mxu0 0.0
  %96 = vmatpush1.msra.mxu0 0.0
  %97 = vmatprep.subr.mxu0 0.0
  %98 = vmatpush1.msra.mxu0 0.0
  %99 = vmatprep.subr.mxu0 0.0
  %100 = vmatpush1.msra.mxu0 0.0
  %101 = vmatprep.subr.mxu0 0.0
  %102 = vmatpush1.msra.mxu0 0.0
  %103 = vmatprep.subr.mxu0 0.0
  %104 = vmatpush1.msra.mxu0 0.0
  %105 = vmatprep.subr.mxu0 0.0
  %106 = vmatpush1.msra.mxu0 0.0
  %107 = vmatprep.mubr.f32.mxu0 0.0
  %108 = vmatmul.mubr.f32.gmra.mrb[0].mxu0 %v41
  %v109 = vpop.f32.mrb[0].mxu0
  %v110 = vadd.f32 %v37, %v109
  %v111 = vpop.f32.mrb[0].mxu0
  %112 = vdwg.mxu0
  %vm113 = vcmp.gt.f32.partialorder %v110, 0.0
  %v114 = vmul.f32 %v110, 1.442695
  %v115 = vpow.pop %v114
  %v116 = vsub.f32 %v115, 1.0
  %v117 = vsel %vm113, %v110, %v116
  %v118 = vld [vmem:[%s3] sm:$0x1f]
  %v119 = vld [vmem:[%s4] sm:$0x1]
  %v121 = vlaneseq
  %v122 = vshrl.u32 %v121, 7
  %v123 = vsub.s32 0, %v122
  %v124 = vrot.slane %v119, %v123
  %vm126 = vcmask 39936
  %v128 = vsel %vm126, %v117, 0
  %vm130 = vcmask 1044480
  %v132 = vsel %vm130, %v118, 0
  %134 = vmatprep.subr.mxu0 0.0
  %135 = vmatpush1.msra.mxu0 %v132
  %136 = vmatprep.subr.mxu0 0.0
  %137 = vmatpush1.msra.mxu0 0.0
  %138 = vmatprep.subr.mxu0 0.0
  %139 = vmatpush1.msra.mxu0 0.0
  %140 = vmatprep.subr.mxu0 0.0
  %141 = vmatpush1.msra.mxu0 0.0
  %142 = vmatprep.subr.mxu0 0.0
  %143 = vmatpush1.msra.mxu0 0.0
  %144 = vmatprep.subr.mxu0 0.0
  %145 = vmatpush1.msra.mxu0 0.0
  %146 = vmatprep.subr.mxu0 0.0
  %147 = vmatpush1.msra.mxu0 0.0
  %148 = vmatprep.subr.mxu0 0.0
  %149 = vmatpush1.msra.mxu0 0.0
  %150 = vmatprep.subr.mxu0 0.0
  %151 = vmatpush1.msra.mxu0 0.0
  %152 = vmatprep.subr.mxu0 0.0
  %153 = vmatpush1.msra.mxu0 0.0
  %154 = vmatprep.subr.mxu0 0.0
  %155 = vmatpush1.msra.mxu0 0.0
  %156 = vmatprep.subr.mxu0 0.0
  %157 = vmatpush1.msra.mxu0 0.0
  %158 = vmatprep.subr.mxu0 0.0
  %159 = vmatpush1.msra.mxu0 0.0
  %160 = vmatprep.subr.mxu0 0.0
  %161 = vmatpush1.msra.mxu0 0.0
  %162 = vmatprep.subr.mxu0 0.0
  %163 = vmatpush1.msra.mxu0 0.0
  %164 = vmatprep.subr.mxu0 0.0
  %165 = vmatpush1.msra.mxu0 0.0
  %166 = vmatprep.subr.mxu0 0.0
  %167 = vmatpush1.msra.mxu0 0.0
  %168 = vmatprep.subr.mxu0 0.0
  %169 = vmatpush1.msra.mxu0 0.0
  %170 = vmatprep.subr.mxu0 0.0
  %171 = vmatpush1.msra.mxu0 0.0
  %172 = vmatprep.subr.mxu0 0.0
  %173 = vmatpush1.msra.mxu0 0.0
  %174 = vmatprep.subr.mxu0 0.0
  %175 = vmatpush1.msra.mxu0 0.0
  %176 = vmatprep.subr.mxu0 0.0
  %177 = vmatpush1.msra.mxu0 0.0
  %178 = vmatprep.subr.mxu0 0.0
  %179 = vmatpush1.msra.mxu0 0.0
  %180 = vmatprep.subr.mxu0 0.0
  %181 = vmatpush1.msra.mxu0 0.0
  %182 = vmatprep.subr.mxu0 0.0
  %183 = vmatpush1.msra.mxu0 0.0
  %184 = vmatprep.subr.mxu0 0.0
  %185 = vmatpush1.msra.mxu0 0.0
  %186 = vmatprep.subr.mxu0 0.0
  %187 = vmatpush1.msra.mxu0 0.0
  %188 = vmatprep.subr.mxu0 0.0
  %189 = vmatpush1.msra.mxu0 0.0
  %190 = vmatprep.subr.mxu0 0.0
  %191 = vmatpush1.msra.mxu0 0.0
  %192 = vmatprep.subr.mxu0 0.0
  %193 = vmatpush1.msra.mxu0 0.0
  %194 = vmatprep.subr.mxu0 0.0
  %195 = vmatpush1.msra.mxu0 0.0
  %196 = vmatprep.subr.mxu0 0.0
  %197 = vmatpush1.msra.mxu0 0.0
  %198 = vmatprep.mubr.f32.mxu0 0.0
  %199 = vmatmul.mubr.f32.gmra.mrb[0].mxu0 %v128
  %v200 = vpop.f32.mrb[0].mxu0
  %v201 = vadd.f32 %v124, %v200
  %v202 = vpop.f32.mrb[0].mxu0
  %203 = vdwg.mxu0
  %vm204 = vcmp.gt.f32.partialorder %v201, 0.0
  %v205 = vmul.f32 %v201, 1.442695
  %v206 = vpow.pop %v205
  %v207 = vsub.f32 %v206, 1.0
  %v208 = vsel %vm204, %v201, %v207
  %v209 = vld [vmem:[%s5] sm:$0x1f]
  %v210 = vld [vmem:[%s6] sm:$0x1]
  %v212 = vlaneseq
  %v213 = vshrl.u32 %v212, 7
  %v214 = vsub.s32 0, %v213
  %v215 = vrot.slane %v210, %v214
  %v218 = vsel %vm126, %v208, 0
  %v221 = vsel %vm130, %v209, 0
  %223 = vmatprep.subr.mxu0 0.0
  %224 = vmatpush1.msra.mxu0 %v221
  %225 = vmatprep.subr.mxu0 0.0
  %226 = vmatpush1.msra.mxu0 0.0
  %227 = vmatprep.subr.mxu0 0.0
  %228 = vmatpush1.msra.mxu0 0.0
  %229 = vmatprep.subr.mxu0 0.0
  %230 = vmatpush1.msra.mxu0 0.0
  %231 = vmatprep.subr.mxu0 0.0
  %232 = vmatpush1.msra.mxu0 0.0
  %233 = vmatprep.subr.mxu0 0.0
  %234 = vmatpush1.msra.mxu0 0.0
  %235 = vmatprep.subr.mxu0 0.0
  %236 = vmatpush1.msra.mxu0 0.0
  %237 = vmatprep.subr.mxu0 0.0
  %238 = vmatpush1.msra.mxu0 0.0
  %239 = vmatprep.subr.mxu0 0.0
  %240 = vmatpush1.msra.mxu0 0.0
  %241 = vmatprep.subr.mxu0 0.0
  %242 = vmatpush1.msra.mxu0 0.0
  %243 = vmatprep.subr.mxu0 0.0
  %244 = vmatpush1.msra.mxu0 0.0
  %245 = vmatprep.subr.mxu0 0.0
  %246 = vmatpush1.msra.mxu0 0.0
  %247 = vmatprep.subr.mxu0 0.0
  %248 = vmatpush1.msra.mxu0 0.0
  %249 = vmatprep.subr.mxu0 0.0
  %250 = vmatpush1.msra.mxu0 0.0
  %251 = vmatprep.subr.mxu0 0.0
  %252 = vmatpush1.msra.mxu0 0.0
  %253 = vmatprep.subr.mxu0 0.0
  %254 = vmatpush1.msra.mxu0 0.0
  %255 = vmatprep.subr.mxu0 0.0
  %256 = vmatpush1.msra.mxu0 0.0
  %257 = vmatprep.subr.mxu0 0.0
  %258 = vmatpush1.msra.mxu0 0.0
  %259 = vmatprep.subr.mxu0 0.0
  %260 = vmatpush1.msra.mxu0 0.0
  %261 = vmatprep.subr.mxu0 0.0
  %262 = vmatpush1.msra.mxu0 0.0
  %263 = vmatprep.subr.mxu0 0.0
  %264 = vmatpush1.msra.mxu0 0.0
  %265 = vmatprep.subr.mxu0 0.0
  %266 = vmatpush1.msra.mxu0 0.0
  %267 = vmatprep.subr.mxu0 0.0
  %268 = vmatpush1.msra.mxu0 0.0
  %269 = vmatprep.subr.mxu0 0.0
  %270 = vmatpush1.msra.mxu0 0.0
  %271 = vmatprep.subr.mxu0 0.0
  %272 = vmatpush1.msra.mxu0 0.0
  %273 = vmatprep.subr.mxu0 0.0
  %274 = vmatpush1.msra.mxu0 0.0
  %275 = vmatprep.subr.mxu0 0.0
  %276 = vmatpush1.msra.mxu0 0.0
  %277 = vmatprep.subr.mxu0 0.0
  %278 = vmatpush1.msra.mxu0 0.0
  %279 = vmatprep.subr.mxu0 0.0
  %280 = vmatpush1.msra.mxu0 0.0
  %281 = vmatprep.subr.mxu0 0.0
  %282 = vmatpush1.msra.mxu0 0.0
  %283 = vmatprep.subr.mxu0 0.0
  %284 = vmatpush1.msra.mxu0 0.0
  %285 = vmatprep.subr.mxu0 0.0
  %286 = vmatpush1.msra.mxu0 0.0
  %287 = vmatprep.mubr.f32.mxu0 0.0
  %288 = vmatmul.mubr.f32.gmra.mrb[0].mxu0 %v218
  %v289 = vpop.f32.mrb[0].mxu0
  %v290 = vadd.f32 %v215, %v289
  %v291 = vpop.f32.mrb[0].mxu0
  %292 = vdwg.mxu0
  %vm293 = vcmask 15360
  %294 = vst.msk [vmem:[%s7] sm:$0xff] %vm293, %v290
  %v295 = vsel %vm293, %v290, 0.0
  %v296 = vrot.slane %v295, 4
  %v297 = vadd.f32 %v295, %v296
  %v298 = vrot.slane %v297, 2
  %v299 = vadd.f32 %v297, %v298
  %v300 = vrot.slane %v299, 1
  %v301 = vadd.f32 %v299, %v300
  %vm302 = vcmask 8192
  %303 = vst.msk [vmem:[%s8] sm:$0x1] %vm302, %v301
  %v304 = vmul.f32 %v290, %v290
  %v305 = vsel %vm293, %v304, 0.0
  %v306 = vrot.slane %v305, 4
  %v307 = vadd.f32 %v305, %v306
  %v308 = vrot.slane %v307, 2
  %v309 = vadd.f32 %v307, %v308
  %v310 = vrot.slane %v309, 1
  %v311 = vadd.f32 %v309, %v310
  %312 = vst.msk [vmem:[%s9] sm:$0x1] %vm302, %v311
  // Predicated region
  $region30: #{tarnet_forward.2} parent=0 // pred_check
    _
  $region31: #{tarnet_forward.2} parent=0 // pred_check_branch
    %314 = sbr.rel (0) target = $region33
  $region32: #{tarnet_forward.2} parent=0 // pred_region
    _
  $region33: #{tarnet_forward.2} parent=0 // pred_fallthru
    _
  // Predicated region
  $region34: #{tarnet_forward.2} parent=0 // pred_check
    _
  $region35: #{tarnet_forward.2} parent=0 // pred_check_branch
    %316 = sbr.rel (0) target = $region37
  $region36: #{tarnet_forward.2} parent=0 // pred_region
    _
  $region37: #{tarnet_forward.2} parent=0 // pred_fallthru
    _
  // Predicated region
  $region38: #{tarnet_forward.2} parent=0 // pred_check
    _
  $region39: #{tarnet_forward.2} parent=0 // pred_check_branch
    %318 = sbr.rel (0) target = $region41
  $region40: #{tarnet_forward.2} parent=0 // pred_region
    _
  $region41: #{tarnet_forward.2} parent=0 // pred_fallthru
    _
  // Predicated region
  $region42: #{tarnet_forward.2} parent=0 // pred_check
    _
  $region43: #{tarnet_forward.2} parent=0 // pred_check_branch
    %320 = sbr.rel (0) target = $region45
  $region44: #{tarnet_forward.2} parent=0 // pred_region
    _
  $region45: #{tarnet_forward.2} parent=0 // pred_fallthru
    _
  // Predicated region
  $region46: #{tarnet_forward.2} parent=0 // pred_check
    _
  $region47: #{tarnet_forward.2} parent=0 // pred_check_branch
    %322 = sbr.rel (0) target = $region49
  $region48: #{tarnet_forward.2} parent=0 // pred_region
    _
  $region49: #{tarnet_forward.2} parent=0 // pred_fallthru
    _
  // Predicated region
  $region50: #{tarnet_forward.2} parent=0 // pred_check
    _
  $region51: #{tarnet_forward.2} parent=0 // pred_check_branch
    %324 = sbr.rel (0) target = $region53
  $region52: #{tarnet_forward.2} parent=0 // pred_region
    _
  $region53: #{tarnet_forward.2} parent=0 // pred_fallthru
    _

// kernel: tarnet_forward.3
$region0: #{tarnet_forward.3}
  #allocation0 [shape = 'u32[]', space=smem, size = 0x4, offset = 0x4, fixed_abs, tag = 'smem constant byte address 0x4 - core index']
  #allocation1 [shape = 'u32[144,128]{1,0:T(1,128)}', space=vmem, size = 0x12000, scoped, tag = 'internal scratch']
  %s0 = inlined_call_operand.vmem [shape: f32[8,2], index: 0, kind: input, shape index: {}]
  %s1 = inlined_call_operand.vmem [shape: f32[1,2], index: 1, kind: input, shape index: {}]
  %s2 = inlined_call_operand.vmem [shape: f32[1,2], index: 2, kind: input, shape index: {}]
  %s3 = inlined_call_operand.vmem [shape: f32[2,10], index: 3, kind: input, shape index: {}]
  %s4 = inlined_call_operand.vmem [shape: f32[1,10], index: 4, kind: input, shape index: {}]
  %s5 = inlined_call_operand.vmem [shape: f32[10,10], index: 5, kind: input, shape index: {}]
  %s6 = inlined_call_operand.vmem [shape: f32[1,10], index: 6, kind: input, shape index: {}]
  %s7 = inlined_call_operand.vmem [shape: f32[10,2], index: 7, kind: input, shape index: {}]
  %s8 = inlined_call_operand.vmem [shape: f32[1,2], index: 8, kind: input, shape index: {}]
  %s9 = inlined_call_operand.vmem [shape: f32[8,2], index: 9, kind: output, shape index: {0}]
  %s10 = inlined_call_operand.vmem [shape: f32[8,2], index: 10, kind: output, shape index: {1}]
  %11 = xla_tuple %s9, %s10
  %s12 = sld [smem:[#allocation0]]
  $region54: #{tarnet_forward.3} parent=0
    _
  %s14 = ssub.s32 1, %s12
  %s15 = scalar_select 0, %s14, %s12
  // Predicated region
  $region2: #{tarnet_forward.3} parent=0 // pred_check
    _
  $region3: #{tarnet_forward.3} parent=0 // pred_check_branch
    %17 = sbr.rel (0) target = $region5
  $region4: #{tarnet_forward.3} parent=0 // pred_region
    _
  $region5: #{tarnet_forward.3} parent=0 // pred_fallthru
    _
  // Predicated region
  $region6: #{tarnet_forward.3} parent=0 // pred_check
    _
  $region7: #{tarnet_forward.3} parent=0 // pred_check_branch
    %19 = sbr.rel (0) target = $region9
  $region8: #{tarnet_forward.3} parent=0 // pred_region
    _
  $region9: #{tarnet_forward.3} parent=0 // pred_fallthru
    _
  // Predicated region
  $region10: #{tarnet_forward.3} parent=0 // pred_check
    _
  $region11: #{tarnet_forward.3} parent=0 // pred_check_branch
    %21 = sbr.rel (0) target = $region13
  $region12: #{tarnet_forward.3} parent=0 // pred_region
    _
  $region13: #{tarnet_forward.3} parent=0 // pred_fallthru
    _
  // Predicated region
  $region14: #{tarnet_forward.3} parent=0 // pred_check
    _
  $region15: #{tarnet_forward.3} parent=0 // pred_check_branch
    %23 = sbr.rel (0) target = $region17
  $region16: #{tarnet_forward.3} parent=0 // pred_region
    _
  $region17: #{tarnet_forward.3} parent=0 // pred_fallthru
    _
  // Predicated region
  $region18: #{tarnet_forward.3} parent=0 // pred_check
    _
  $region19: #{tarnet_forward.3} parent=0 // pred_check_branch
    %25 = sbr.rel (0) target = $region21
  $region20: #{tarnet_forward.3} parent=0 // pred_region
    _
  $region21: #{tarnet_forward.3} parent=0 // pred_fallthru
    _
  // Predicated region
  $region22: #{tarnet_forward.3} parent=0 // pred_check
    _
  $region23: #{tarnet_forward.3} parent=0 // pred_check_branch
    %27 = sbr.rel (0) target = $region25
  $region24: #{tarnet_forward.3} parent=0 // pred_region
    _
  $region25: #{tarnet_forward.3} parent=0 // pred_fallthru
    _
  // Predicated region
  $region26: #{tarnet_forward.3} parent=0 // pred_check
    _
  $region27: #{tarnet_forward.3} parent=0 // pred_check_branch
    %29 = sbr.rel (0) target = $region29
  $region28: #{tarnet_forward.3} parent=0 // pred_region
    _
  $region29: #{tarnet_forward.3} parent=0 // pred_fallthru
    _
  // Predicated region
  $region30: #{tarnet_forward.3} parent=0 // pred_check
    _
  $region31: #{tarnet_forward.3} parent=0 // pred_check_branch
    %31 = sbr.rel (0) target = $region33
  $region32: #{tarnet_forward.3} parent=0 // pred_region
    _
  $region33: #{tarnet_forward.3} parent=0 // pred_fallthru
    _
  // Predicated region
  $region34: #{tarnet_forward.3} parent=0 // pred_check
    _
  $region35: #{tarnet_forward.3} parent=0 // pred_check_branch
    %33 = sbr.rel (0) target = $region37
  $region36: #{tarnet_forward.3} parent=0 // pred_region
    _
  $region37: #{tarnet_forward.3} parent=0 // pred_fallthru
    _
  %v34 = vld [vmem:[%s0] sm:$0xff]
  %v35 = vld [vmem:[%s1] sm:$0x1]
  %v37 = vlaneseq
  %v38 = vshrl.u32 %v37, 7
  %v39 = vsub.s32 0, %v38
  %v40 = vrot.slane %v35, %v39
  %v42 = vmul.f32 %v34, %v40
  %v43 = vld [vmem:[%s2] sm:$0x1]
  %v45 = vlaneseq
  %v46 = vshrl.u32 %v45, 7
  %v47 = vsub.s32 0, %v46
  %v48 = vrot.slane %v43, %v47
  %v50 = vadd.f32 %v42, %v48
  %vm51 = vcmask 15360
  %52 = vst.msk [vmem:[%s10] sm:$0xff] %vm51, %v50
  %v53 = vld [vmem:[%s3] sm:$0x3]
  %v54 = vld [vmem:[%s4] sm:$0x1]
  %v56 = vlaneseq
  %v57 = vshrl.u32 %v56, 7
  %v58 = vsub.s32 0, %v57
  %v59 = vrot.slane %v54, %v58
  %v62 = vsel %vm51, %v50, 0
  %vm64 = vcmask 1041408
  %v66 = vsel %vm64, %v53, 0
  %68 = vmatprep.subr.mxu0 0.0
  %69 = vmatpush1.msra.mxu0 %v66
  %70 = vmatprep.subr.mxu0 0.0
  %71 = vmatpush1.msra.mxu0 0.0
  %72 = vmatprep.subr.mxu0 0.0
  %73 = vmatpush1.msra.mxu0 0.0
  %74 = vmatprep.subr.mxu0 0.0
  %75 = vmatpush1.msra.mxu0 0.0
  %76 = vmatprep.subr.mxu0 0.0
  %77 = vmatpush1.msra.mxu0 0.0
  %78 = vmatprep.subr.mxu0 0.0
  %79 = vmatpush1.msra.mxu0 0.0
  %80 = vmatprep.subr.mxu0 0.0
  %81 = vmatpush1.msra.mxu0 0.0
  %82 = vmatprep.subr.mxu0 0.0
  %83 = vmatpush1.msra.mxu0 0.0
  %84 = vmatprep.subr.mxu0 0.0
  %85 = vmatpush1.msra.mxu0 0.0
  %86 = vmatprep.subr.mxu0 0.0
  %87 = vmatpush1.msra.mxu0 0.0
  %88 = vmatprep.subr.mxu0 0.0
  %89 = vmatpush1.msra.mxu0 0.0
  %90 = vmatprep.subr.mxu0 0.0
  %91 = vmatpush1.msra.mxu0 0.0
  %92 = vmatprep.subr.mxu0 0.0
  %93 = vmatpush1.msra.mxu0 0.0
  %94 = vmatprep.subr.mxu0 0.0
  %95 = vmatpush1.msra.mxu0 0.0
  %96 = vmatprep.subr.mxu0 0.0
  %97 = vmatpush1.msra.mxu0 0.0
  %98 = vmatprep.subr.mxu0 0.0
  %99 = vmatpush1.msra.mxu0 0.0
  %100 = vmatprep.subr.mxu0 0.0
  %101 = vmatpush1.msra.mxu0 0.0
  %102 = vmatprep.subr.mxu0 0.0
  %103 = vmatpush1.msra.mxu0 0.0
  %104 = vmatprep.subr.mxu0 0.0
  %105 = vmatpush1.msra.mxu0 0.0
  %106 = vmatprep.subr.mxu0 0.0
  %107 = vmatpush1.msra.mxu0 0.0
  %108 = vmatprep.subr.mxu0 0.0
  %109 = vmatpush1.msra.mxu0 0.0
  %110 = vmatprep.subr.mxu0 0.0
  %111 = vmatpush1.msra.mxu0 0.0
  %112 = vmatprep.subr.mxu0 0.0
  %113 = vmatpush1.msra.mxu0 0.0
  %114 = vmatprep.subr.mxu0 0.0
  %115 = vmatpush1.msra.mxu0 0.0
  %116 = vmatprep.subr.mxu0 0.0
  %117 = vmatpush1.msra.mxu0 0.0
  %118 = vmatprep.subr.mxu0 0.0
  %119 = vmatpush1.msra.mxu0 0.0
  %120 = vmatprep.subr.mxu0 0.0
  %121 = vmatpush1.msra.mxu0 0.0
  %122 = vmatprep.subr.mxu0 0.0
  %123 = vmatpush1.msra.mxu0 0.0
  %124 = vmatprep.subr.mxu0 0.0
  %125 = vmatpush1.msra.mxu0 0.0
  %126 = vmatprep.subr.mxu0 0.0
  %127 = vmatpush1.msra.mxu0 0.0
  %128 = vmatprep.subr.mxu0 0.0
  %129 = vmatpush1.msra.mxu0 0.0
  %130 = vmatprep.subr.mxu0 0.0
  %131 = vmatpush1.msra.mxu0 0.0
  %132 = vmatprep.mubr.f32.mxu0 0.0
  %133 = vmatmul.mubr.f32.gmra.mrb[0].mxu0 %v62
  %v134 = vpop.f32.mrb[0].mxu0
  %v135 = vadd.f32 %v59, %v134
  %v136 = vpop.f32.mrb[0].mxu0
  %137 = vdwg.mxu0
  %vm138 = vcmp.gt.f32.partialorder %v135, 0.0
  %v139 = vmul.f32 %v135, 1.442695
  %v140 = vpow.pop %v139
  %v141 = vsub.f32 %v140, 1.0
  %v142 = vsel %vm138, %v135, %v141
  %v143 = vld [vmem:[%s5] sm:$0xff]
  %v144 = vld [vmem:[%s5 + $0x8] sm:$0x3]
  %v145 = vld [vmem:[%s6] sm:$0x1]
  %v147 = vlaneseq
  %v148 = vshrl.u32 %v147, 7
  %v149 = vsub.s32 0, %v148
  %v150 = vrot.slane %v145, %v149
  %vm152 = vcmask 80896
  %v154 = vsel %vm152, %v142, 0
  %v157 = vsel %vm64, %v144, 0
  %159 = vmatprep.subr.mxu0 0.0
  %160 = vmatpush1.msra.mxu0 %v143
  %161 = vmatprep.subr.mxu0 0.0
  %162 = vmatpush1.msra.mxu0 %v157
  %163 = vmatprep.subr.mxu0 0.0
  %164 = vmatpush1.msra.mxu0 0.0
  %165 = vmatprep.subr.mxu0 0.0
  %166 = vmatpush1.msra.mxu0 0.0
  %167 = vmatprep.subr.mxu0 0.0
  %168 = vmatpush1.msra.mxu0 0.0
  %169 = vmatprep.subr.mxu0 0.0
  %170 = vmatpush1.msra.mxu0 0.0
  %171 = vmatprep.subr.mxu0 0.0
  %172 = vmatpush1.msra.mxu0 0.0
  %173 = vmatprep.subr.mxu0 0.0
  %174 = vmatpush1.msra.mxu0 0.0
  %175 = vmatprep.subr.mxu0 0.0
  %176 = vmatpush1.msra.mxu0 0.0
  %177 = vmatprep.subr.mxu0 0.0
  %178 = vmatpush1.msra.mxu0 0.0
  %179 = vmatprep.subr.mxu0 0.0
  %180 = vmatpush1.msra.mxu0 0.0
  %181 = vmatprep.subr.mxu0 0.0
  %182 = vmatpush1.msra.mxu0 0.0
  %183 = vmatprep.subr.mxu0 0.0
  %184 = vmatpush1.msra.mxu0 0.0
  %185 = vmatprep.subr.mxu0 0.0
  %186 = vmatpush1.msra.mxu0 0.0
  %187 = vmatprep.subr.mxu0 0.0
  %188 = vmatpush1.msra.mxu0 0.0
  %189 = vmatprep.subr.mxu0 0.0
  %190 = vmatpush1.msra.mxu0 0.0
  %191 = vmatprep.subr.mxu0 0.0
  %192 = vmatpush1.msra.mxu0 0.0
  %193 = vmatprep.subr.mxu0 0.0
  %194 = vmatpush1.msra.mxu0 0.0
  %195 = vmatprep.subr.mxu0 0.0
  %196 = vmatpush1.msra.mxu0 0.0
  %197 = vmatprep.subr.mxu0 0.0
  %198 = vmatpush1.msra.mxu0 0.0
  %199 = vmatprep.subr.mxu0 0.0
  %200 = vmatpush1.msra.mxu0 0.0
  %201 = vmatprep.subr.mxu0 0.0
  %202 = vmatpush1.msra.mxu0 0.0
  %203 = vmatprep.subr.mxu0 0.0
  %204 = vmatpush1.msra.mxu0 0.0
  %205 = vmatprep.subr.mxu0 0.0
  %206 = vmatpush1.msra.mxu0 0.0
  %207 = vmatprep.subr.mxu0 0.0
  %208 = vmatpush1.msra.mxu0 0.0
  %209 = vmatprep.subr.mxu0 0.0
  %210 = vmatpush1.msra.mxu0 0.0
  %211 = vmatprep.subr.mxu0 0.0
  %212 = vmatpush1.msra.mxu0 0.0
  %213 = vmatprep.subr.mxu0 0.0
  %214 = vmatpush1.msra.mxu0 0.0
  %215 = vmatprep.subr.mxu0 0.0
  %216 = vmatpush1.msra.mxu0 0.0
  %217 = vmatprep.subr.mxu0 0.0
  %218 = vmatpush1.msra.mxu0 0.0
  %219 = vmatprep.subr.mxu0 0.0
  %220 = vmatpush1.msra.mxu0 0.0
  %221 = vmatprep.subr.mxu0 0.0
  %222 = vmatpush1.msra.mxu0 0.0
  %223 = vmatprep.mubr.f32.mxu0 0.0
  %224 = vmatmul.mubr.f32.gmra.mrb[0].mxu0 %v154
  %v225 = vpop.f32.mrb[0].mxu0
  %v226 = vadd.f32 %v150, %v225
  %v227 = vpop.f32.mrb[0].mxu0
  %228 = vdwg.mxu0
  %vm229 = vcmp.gt.f32.partialorder %v226, 0.0
  %v230 = vmul.f32 %v226, 1.442695
  %v231 = vpow.pop %v230
  %v232 = vsub.f32 %v231, 1.0
  %v233 = vsel %vm229, %v226, %v232
  %v234 = vld [vmem:[%s7] sm:$0xff]
  %v235 = vld [vmem:[%s7 + $0x8] sm:$0x3]
  %v236 = vld [vmem:[%s8] sm:$0x1]
  %v238 = vlaneseq
  %v239 = vshrl.u32 %v238, 7
  %v240 = vsub.s32 0, %v239
  %v241 = vrot.slane %v236, %v240
  %v244 = vsel %vm152, %v233, 0
  %v247 = vsel %vm64, %v235, 0
  %249 = vmatprep.subr.mxu0 0.0
  %250 = vmatpush1.msra.mxu0 %v234
  %251 = vmatprep.subr.mxu0 0.0
  %252 = vmatpush1.msra.mxu0 %v247
  %253 = vmatprep.subr.mxu0 0.0
  %254 = vmatpush1.msra.mxu0 0.0
  %255 = vmatprep.subr.mxu0 0.0
  %256 = vmatpush1.msra.mxu0 0.0
  %257 = vmatprep.subr.mxu0 0.0
  %258 = vmatpush1.msra.mxu0 0.0
  %259 = vmatprep.subr.mxu0 0.0
  %260 = vmatpush1.msra.mxu0 0.0
  %261 = vmatprep.subr.mxu0 0.0
  %262 = vmatpush1.msra.mxu0 0.0
  %263 = vmatprep.subr.mxu0 0.0
  %264 = vmatpush1.msra.mxu0 0.0
  %265 = vmatprep.subr.mxu0 0.0
  %266 = vmatpush1.msra.mxu0 0.0
  %267 = vmatprep.subr.mxu0 0.0
  %268 = vmatpush1.msra.mxu0 0.0
  %269 = vmatprep.subr.mxu0 0.0
  %270 = vmatpush1.msra.mxu0 0.0
  %271 = vmatprep.subr.mxu0 0.0
  %272 = vmatpush1.msra.mxu0 0.0
  %273 = vmatprep.subr.mxu0 0.0
  %274 = vmatpush1.msra.mxu0 0.0
  %275 = vmatprep.subr.mxu0 0.0
  %276 = vmatpush1.msra.mxu0 0.0
  %277 = vmatprep.subr.mxu0 0.0
  %278 = vmatpush1.msra.mxu0 0.0
  %279 = vmatprep.subr.mxu0 0.0
  %280 = vmatpush1.msra.mxu0 0.0
  %281 = vmatprep.subr.mxu0 0.0
  %282 = vmatpush1.msra.mxu0 0.0
  %283 = vmatprep.subr.mxu0 0.0
  %284 = vmatpush1.msra.mxu0 0.0
  %285 = vmatprep.subr.mxu0 0.0
  %286 = vmatpush1.msra.mxu0 0.0
  %287 = vmatprep.subr.mxu0 0.0
  %288 = vmatpush1.msra.mxu0 0.0
  %289 = vmatprep.subr.mxu0 0.0
  %290 = vmatpush1.msra.mxu0 0.0
  %291 = vmatprep.subr.mxu0 0.0
  %292 = vmatpush1.msra.mxu0 0.0
  %293 = vmatprep.subr.mxu0 0.0
  %294 = vmatpush1.msra.mxu0 0.0
  %295 = vmatprep.subr.mxu0 0.0
  %296 = vmatpush1.msra.mxu0 0.0
  %297 = vmatprep.subr.mxu0 0.0
  %298 = vmatpush1.msra.mxu0 0.0
  %299 = vmatprep.subr.mxu0 0.0
  %300 = vmatpush1.msra.mxu0 0.0
  %301 = vmatprep.subr.mxu0 0.0
  %302 = vmatpush1.msra.mxu0 0.0
  %303 = vmatprep.subr.mxu0 0.0
  %304 = vmatpush1.msra.mxu0 0.0
  %305 = vmatprep.subr.mxu0 0.0
  %306 = vmatpush1.msra.mxu0 0.0
  %307 = vmatprep.subr.mxu0 0.0
  %308 = vmatpush1.msra.mxu0 0.0
  %309 = vmatprep.subr.mxu0 0.0
  %310 = vmatpush1.msra.mxu0 0.0
  %311 = vmatprep.subr.mxu0 0.0
  %312 = vmatpush1.msra.mxu0 0.0
  %313 = vmatprep.mubr.f32.mxu0 0.0
  %314 = vmatmul.mubr.f32.gmra.mrb[0].mxu0 %v244
  %v315 = vpop.f32.mrb[0].mxu0
  %v316 = vadd.f32 %v241, %v315
  %v317 = vpop.f32.mrb[0].mxu0
  %318 = vdwg.mxu0
  %319 = vst.msk [vmem:[%s9] sm:$0xff] %vm51, %v316
  // Predicated region
  $region38: #{tarnet_forward.3} parent=0 // pred_check
    _
  $region39: #{tarnet_forward.3} parent=0 // pred_check_branch
    %321 = sbr.rel (0) target = $region41
  $region40: #{tarnet_forward.3} parent=0 // pred_region
    _
  $region41: #{tarnet_forward.3} parent=0 // pred_fallthru
    _
  // Predicated region
  $region42: #{tarnet_forward.3} parent=0 // pred_check
    _
  $region43: #{tarnet_forward.3} parent=0 // pred_check_branch
    %323 = sbr.rel (0) target = $region45
  $region44: #{tarnet_forward.3} parent=0 // pred_region
    _
  $region45: #{tarnet_forward.3} parent=0 // pred_fallthru
    _
  // Predicated region
  $region46: #{tarnet_forward.3} parent=0 // pred_check
    _
  $region47: #{tarnet_forward.3} parent=0 // pred_check_branch
    %325 = sbr.rel (0) target = $region49
  $region48: #{tarnet_forward.3} parent=0 // pred_region
    _
  $region49: #{tarnet_forward.3} parent=0 // pred_fallthru
    _
  // Predicated region
  $region50: #{tarnet_forward.3} parent=0 // pred_check
    _
  $region51: #{tarnet_forward.3} parent=0 // pred_check_branch
    %327 = sbr.rel (0) target = $region53
  $region52: #{tarnet_forward.3} parent=0 // pred_region
    _
  $region53: #{tarnet_forward.3} parent=0 // pred_fallthru
    _

</llo_original>
